<compile_context>
chip_gen: v6e
topology: v6e:2x2x1
jax: 0.10.0
libtpu: 0.0.40
codegen_flags: <defaults>
</compile_context>

<pallas_src>
import jax
import jax.numpy as jnp
import numpy as np
from jax.experimental import pallas as pl
from jax.experimental.pallas import tpu as pltpu

# ---- problem sizes (small, consistent with the module) ----------------------
B, S, D = 2, 8, 32          # batch, sequence, in_features
GRID_SIZE = (4, 4)          # expert grid dims
G = sum(GRID_SIZE)          # proj output size (total_grid_size)
E = int(np.prod(GRID_SIZE)) # total number of experts in the grid
K = 4                       # k_best
D_OUT = 32                  # synthetic expert output feature size


# -------------- fused kernel: packed (lane-dense) expert matmul --------------
def packed_expert_matmul_kernel(x_ref, w_ref, y_ref):
    # x_ref : (B, S, D)        bf16  VMEM   input rows
    # w_ref : (B, D, K*D_OUT)  bf16  VMEM   per-row slab of the K selected expert
    #                                        weights, concatenated along lanes and
    #                                        pre-scaled by the softmax weights
    # y_ref : (B, S, K*D_OUT)  f32   VMEM   pre-combine output slab (128-lane store)
    #
    # Single grid step; batch is a static unrolled loop (B=2).  Each dot is one
    # (8,32)x(32,128) bf16 MXU matmul with f32 accumulation -> one unmasked
    # 128-lane store per row.
    for b in range(x_ref.shape[0]):
        y_ref[b] = jnp.dot(x_ref[b], w_ref[b], preferred_element_type=jnp.float32)


def packed_expert_matmul(x_bf16, w_cat_bf16):
    """y[b] = x[b] @ w_cat[b]  with f32 accumulation; single pallas_call, no grid."""
    b_, s_, d_ = x_bf16.shape
    kd = w_cat_bf16.shape[-1]
    flops = 2 * b_ * s_ * d_ * kd
    bytes_accessed = x_bf16.size * 2 + w_cat_bf16.size * 2 + b_ * s_ * kd * 4
    return pl.pallas_call(
        packed_expert_matmul_kernel,
        out_shape=jax.ShapeDtypeStruct((b_, s_, kd), jnp.float32),
        in_specs=[
            pl.BlockSpec(memory_space=pltpu.MemorySpace.VMEM),   # x, whole array in VMEM
            pl.BlockSpec(memory_space=pltpu.MemorySpace.VMEM),   # packed weight slabs
        ],
        out_specs=pl.BlockSpec(memory_space=pltpu.MemorySpace.VMEM),
        cost_estimate=pl.CostEstimate(
            flops=flops, transcendentals=0, bytes_accessed=bytes_accessed),
    )(x_bf16, w_cat_bf16)


# --------------------- gating + expert selection (plain XLA) -----------------
def gate_and_select(x, proj_w, proj_b):
    # Gating: mean over all dims except first/last + Linear(D -> total_grid_size).
    # G=8 output lanes -> far below a vreg; kept in XLA per the perf review.
    if x.ndim != 2:
        pooled = x.mean(axis=tuple(range(1, x.ndim - 1)))
    else:
        pooled = x
    scores = pooled @ proj_w.T + proj_b                          # [B, G]
    g0, g1 = scores[:, : GRID_SIZE[0]], scores[:, GRID_SIZE[0]:]

    # TODO(synk): DHT beam search (MoEBeamSearcher.batch_find_best_experts) and the
    # remote RPC expert calls (_RemoteCallMany) have no Pallas equivalent; simulated
    # by exact top-k over the enumerated expert grid and local synthetic experts.
    combined = (g0[:, :, None] + g1[:, None, :]).reshape(x.shape[0], E)
    _, flat_idx = jax.lax.top_k(combined, K)                     # [B, K]
    flat_idx = flat_idx.astype(jnp.int32)
    i0 = flat_idx // GRID_SIZE[1]
    i1 = flat_idx % GRID_SIZE[1]

    # compute_expert_scores + masked softmax (all experts "responded" here, but the
    # mask / all-failed guard semantics of the module are preserved).
    expert_logits = (jnp.take_along_axis(g0, i0, axis=1)
                     + jnp.take_along_axis(g1, i1, axis=1))      # [B, K]
    expert_mask = jnp.ones(expert_logits.shape, dtype=bool)
    masked_logits = jnp.where(expert_mask, expert_logits, -jnp.inf)
    expert_weights = jax.nn.softmax(masked_logits, axis=1)
    expert_weights = jnp.where(jnp.any(expert_mask, axis=1, keepdims=True),
                               expert_weights, 0.0).astype(jnp.float32)
    return flat_idx, expert_weights


# ------------------------------ full forward ---------------------------------
def remote_moe_forward(x, proj_w, proj_b, exp_w, exp_b):
    b_, s_, _ = x.shape
    flat_idx, expert_weights = gate_and_select(x, proj_w, proj_b)

    # Gather the K selected experts into a lane-dense (D, K*D_OUT)=(32,128) slab per
    # row, folding the softmax weights in (pre-scaled).  Tiny XLA gather/scale.
    w_sel = exp_w[flat_idx]                                             # (B, K, D, D_OUT)
    w_cat = (expert_weights[:, :, None, None] * w_sel)                  # scale in f32
    w_cat = w_cat.transpose(0, 2, 1, 3).reshape(b_, D, K * D_OUT)       # (B, D, K*D_OUT)

    # Bias folded out of the kernel: bias[b] = sum_k sw[b,k] * exp_b[idx[b,k]].
    bias = (expert_weights[:, :, None] * exp_b[flat_idx]).sum(axis=1)   # (B, D_OUT)

    # Fused "remote" expert matmuls: bf16 MXU inputs, f32 accumulate, single grid step,
    # 128-lane-dense output slab.
    y_slab = packed_expert_matmul(x.astype(jnp.bfloat16),
                                  w_cat.astype(jnp.bfloat16))           # (B, S, K*D_OUT)

    # Combine = sum of the K static 32-lane chunks (+ combined bias).  Done in the
    # wrapper so the kernel store stays a full 128-lane unmasked vst (per review);
    # the 8 KiB round-trip is negligible at these sizes.
    out = y_slab.reshape(b_, s_, K, D_OUT).sum(axis=2) + bias[:, None, :]
    return out


# ------------------------------ pure-JAX reference ---------------------------
def reference(x, proj_w, proj_b, exp_w, exp_b):
    flat_idx, expert_weights = gate_and_select(x, proj_w, proj_b)
    y = jnp.einsum("bsd,bkdo->bkso", x, exp_w[flat_idx],
                   precision=jax.lax.Precision.HIGHEST) + exp_b[flat_idx][:, :, None, :]
    return jnp.einsum("bk,bkso->bso", expert_weights, y,
                      precision=jax.lax.Precision.HIGHEST)


if __name__ == "__main__":
    key = jax.random.PRNGKey(0)
    kx, kw, kb, kew, keb = jax.random.split(key, 5)

    x = jax.random.normal(kx, (B, S, D), dtype=jnp.float32)
    proj_w = jax.random.normal(kw, (G, D), dtype=jnp.float32) * 0.1    # nn.Linear weight [G, D]
    proj_b = jax.random.normal(kb, (G,), dtype=jnp.float32) * 0.1      # nn.Linear bias   [G]
    exp_w = jax.random.normal(kew, (E, D, D_OUT), dtype=jnp.float32) * 0.1
    exp_b = jax.random.normal(keb, (E, D_OUT), dtype=jnp.float32) * 0.1

    fwd = jax.jit(remote_moe_forward)
    out = jax.block_until_ready(fwd(x, proj_w, proj_b, exp_w, exp_b))

    ref = jax.block_until_ready(reference(x, proj_w, proj_b, exp_w, exp_b))

    # Tolerance sized for bf16 MXU inputs (f32 accumulation) vs. an f32-HIGHEST
    # reference; a structural bug (wrong expert / wrong weight) would show as O(1e-1).
    np.testing.assert_allclose(np.asarray(out), np.asarray(ref), rtol=2e-2, atol=2e-2)

    print("KERNEL_OK")
</pallas_src>

<mosaic_0001>
module attributes {stable_mosaic.version = 11 : i64} {
  func.func @packed_expert_matmul_kernel(%arg0: memref<2x8x32xbf16, #tpu.memory_space<vmem>>, %arg1: memref<2x32x128xbf16, #tpu.memory_space<vmem>>, %arg2: memref<2x8x128xf32, #tpu.memory_space<vmem>>) attributes {dimension_semantics = [], scalar_prefetch = 0 : i64, scratch_operands = 0 : i64, tpu.core_type = #tpu.core_type<tc>} {
    %c0 = arith.constant 0 : index
    %c0_0 = arith.constant 0 : index
    %c0_1 = arith.constant 0 : index
    %0 = vector.load %arg0[%c0, %c0_0, %c0_1] : memref<2x8x32xbf16, #tpu.memory_space<vmem>>, vector<1x8x32xbf16>
    %1 = vector.shape_cast %0 : vector<1x8x32xbf16> to vector<8x32xbf16>
    %c0_2 = arith.constant 0 : index
    %c0_3 = arith.constant 0 : index
    %c0_4 = arith.constant 0 : index
    %2 = vector.load %arg1[%c0_2, %c0_3, %c0_4] : memref<2x32x128xbf16, #tpu.memory_space<vmem>>, vector<1x32x128xbf16>
    %3 = vector.shape_cast %2 : vector<1x32x128xbf16> to vector<32x128xbf16>
    %cst = arith.constant dense<0.000000e+00> : vector<8x128xf32>
    %4 = tpu.matmul %1, %3, %cst {dimension_numbers = #tpu.dot_dimension_numbers<[1], [0], [0], [1], [0, 0, 1, 1], [], []>} : vector<8x32xbf16>, vector<32x128xbf16>, vector<8x128xf32> -> vector<8x128xf32>
    %c0_5 = arith.constant 0 : index
    %c0_6 = arith.constant 0 : index
    %c0_7 = arith.constant 0 : index
    %5 = vector.load %arg2[%c0_5, %c0_6, %c0_7] : memref<2x8x128xf32, #tpu.memory_space<vmem>>, vector<1x8x128xf32>
    %6 = vector.shape_cast %5 : vector<1x8x128xf32> to vector<8x128xf32>
    %7 = vector.shape_cast %4 : vector<8x128xf32> to vector<1x8x128xf32>
    tpu.vector_store %arg2[%c0_5, %c0_6, %c0_7], %7 {strides = array<i32>} : memref<2x8x128xf32, #tpu.memory_space<vmem>>, vector<1x8x128xf32>,
    %c1 = arith.constant 1 : index
    %c0_8 = arith.constant 0 : index
    %c0_9 = arith.constant 0 : index
    %8 = vector.load %arg0[%c1, %c0_8, %c0_9] : memref<2x8x32xbf16, #tpu.memory_space<vmem>>, vector<1x8x32xbf16>
    %9 = vector.shape_cast %8 : vector<1x8x32xbf16> to vector<8x32xbf16>
    %c1_10 = arith.constant 1 : index
    %c0_11 = arith.constant 0 : index
    %c0_12 = arith.constant 0 : index
    %10 = vector.load %arg1[%c1_10, %c0_11, %c0_12] : memref<2x32x128xbf16, #tpu.memory_space<vmem>>, vector<1x32x128xbf16>
    %11 = vector.shape_cast %10 : vector<1x32x128xbf16> to vector<32x128xbf16>
    %cst_13 = arith.constant dense<0.000000e+00> : vector<8x128xf32>
    %12 = tpu.matmul %9, %11, %cst_13 {dimension_numbers = #tpu.dot_dimension_numbers<[1], [0], [0], [1], [0, 0, 1, 1], [], []>} : vector<8x32xbf16>, vector<32x128xbf16>, vector<8x128xf32> -> vector<8x128xf32>
    %c1_14 = arith.constant 1 : index
    %c0_15 = arith.constant 0 : index
    %c0_16 = arith.constant 0 : index
    %13 = vector.load %arg2[%c1_14, %c0_15, %c0_16] : memref<2x8x128xf32, #tpu.memory_space<vmem>>, vector<1x8x128xf32>
    %14 = vector.shape_cast %13 : vector<1x8x128xf32> to vector<8x128xf32>
    %15 = vector.shape_cast %12 : vector<8x128xf32> to vector<1x8x128xf32>
    tpu.vector_store %arg2[%c1_14, %c0_15, %c0_16], %15 {strides = array<i32>} : memref<2x8x128xf32, #tpu.memory_space<vmem>>, vector<1x8x128xf32>,
    return
  }
}

</mosaic_0001>

<llo_original>
// kernel: remote_moe_forward.1
$region0: #{remote_moe_forward.1}
  #allocation0 [shape = 'u32[]', space=smem, size = 0x4, offset = 0x4, fixed_abs, tag = 'smem constant byte address 0x4 - core index']
  #allocation1 [shape = 'u32[144,128]{1,0:T(1,128)}', space=vmem, size = 0x12000, scoped, tag = 'internal scratch']
  %s0 = inlined_call_operand.vmem [shape: bf16[2,8,32], index: 0, kind: input, shape index: {}]
  %s1 = inlined_call_operand.vmem [shape: bf16[2,32,128], index: 1, kind: input, shape index: {}]
  %s2 = inlined_call_operand.vmem [shape: f32[2,8,128], index: 2, kind: output, shape index: {}]
  %s3 = sld [smem:[#allocation0]]
  $region18: #{remote_moe_forward.1} parent=0
    _
  %s5 = ssub.s32 1, %s3
  %s6 = scalar_select 0, %s5, %s3
  // Predicated region
  $region2: #{remote_moe_forward.1} parent=0 // pred_check
    _
  $region3: #{remote_moe_forward.1} parent=0 // pred_check_branch
    %8 = sbr.rel (0) target = $region5
  $region4: #{remote_moe_forward.1} parent=0 // pred_region
    _
  $region5: #{remote_moe_forward.1} parent=0 // pred_fallthru
    _
  // Predicated region
  $region6: #{remote_moe_forward.1} parent=0 // pred_check
    _
  $region7: #{remote_moe_forward.1} parent=0 // pred_check_branch
    %10 = sbr.rel (0) target = $region9
  $region8: #{remote_moe_forward.1} parent=0 // pred_region
    _
  $region9: #{remote_moe_forward.1} parent=0 // pred_fallthru
    _
  %v12 = vld [vmem:[%s0] sm:$0xf]
  %v13 = vld [vmem:[%s1] sm:$0xf]
  %v14 = vld [vmem:[%s1 + $0x4] sm:$0xf]
  %v15 = vld [vmem:[%s1 + $0x8] sm:$0xf]
  %v16 = vld [vmem:[%s1 + $0xc] sm:$0xf]
  %v21 = vunpack.c.l.b16 %v13
  %v22 = vunpack.c.l.b16 %v14
  %v23 = vunpack.c.l.b16 %v15
  %v24 = vunpack.c.l.b16 %v16
  %v25 = vpack.c.b16 %v22, %v21
  %v26 = vpack.c.b16 %v24, %v23
  %vm29 = vcmask 261120
  %v31 = vsel %vm29, %v12, 0
  %33 = vmatprep.subr.bf16.mxu0 0
  %34 = vmatpush1.bf16.msra.mxu0 0
  %35 = vmatprep.subr.bf16.mxu0 0
  %36 = vmatpush1.bf16.msra.mxu0 0
  %37 = vmatprep.subr.bf16.mxu0 0
  %38 = vmatpush1.bf16.msra.mxu0 0
  %39 = vmatprep.subr.bf16.mxu0 0
  %40 = vmatpush1.bf16.msra.mxu0 0
  %41 = vmatprep.subr.bf16.mxu0 0
  %42 = vmatpush1.bf16.msra.mxu0 0
  %43 = vmatprep.subr.bf16.mxu0 0
  %44 = vmatpush1.bf16.msra.mxu0 0
  %45 = vmatprep.subr.bf16.mxu0 0
  %46 = vmatpush1.bf16.msra.mxu0 %v26
  %47 = vmatprep.subr.bf16.mxu0 0
  %48 = vmatpush1.bf16.msra.mxu0 %v25
  %49 = vmatprep.subr.bf16.mxu0 0
  %50 = vmatpush2.bf16.msra.mxu0 0
  %51 = vmatprep.subr.bf16.mxu0 0
  %52 = vmatpush2.bf16.msra.mxu0 0
  %53 = vmatprep.subr.bf16.mxu0 0
  %54 = vmatpush2.bf16.msra.mxu0 0
  %55 = vmatprep.subr.bf16.mxu0 0
  %56 = vmatpush2.bf16.msra.mxu0 0
  %57 = vmatprep.subr.bf16.mxu0 0
  %58 = vmatpush2.bf16.msra.mxu0 0
  %59 = vmatprep.subr.bf16.mxu0 0
  %60 = vmatpush2.bf16.msra.mxu0 0
  %61 = vmatprep.subr.bf16.mxu0 0
  %62 = vmatpush2.bf16.msra.mxu0 0
  %63 = vmatprep.subr.bf16.mxu0 0
  %64 = vmatpush2.bf16.msra.mxu0 0
  %65 = vmatprep.mubr.bf16.mxu0 0
  %66 = vmatmul.mubr.bf16.gmra.mxu0 %v31
  %v67 = vpop.f32.mrf.mxu0
  %v68 = vadd.f32 0.0, %v67
  %v69 = vpop.f32.mrf.mxu0
  %v70 = vpop.f32.mrf.mxu0
  %v71 = vpop.f32.mrf.mxu0
  %72 = vdwg.mxu0
  %73 = vst [vmem:[%s2] sm:$0xff] %v68
  %s74 = scalar_lea.vmem %s0, 4
  %v75 = vld [vmem:[%s74] sm:$0xf]
  %s76 = scalar_lea.vmem %s1, 16
  %v77 = vld [vmem:[%s76] sm:$0xf]
  %v78 = vld [vmem:[%s76 + $0x4] sm:$0xf]
  %v79 = vld [vmem:[%s76 + $0x8] sm:$0xf]
  %v80 = vld [vmem:[%s76 + $0xc] sm:$0xf]
  %v85 = vunpack.c.l.b16 %v77
  %v86 = vunpack.c.l.b16 %v78
  %v87 = vunpack.c.l.b16 %v79
  %v88 = vunpack.c.l.b16 %v80
  %v89 = vpack.c.b16 %v86, %v85
  %v90 = vpack.c.b16 %v88, %v87
  %v94 = vsel %vm29, %v75, 0
  %96 = vmatprep.subr.bf16.mxu0 0
  %97 = vmatpush1.bf16.msra.mxu0 0
  %98 = vmatprep.subr.bf16.mxu0 0
  %99 = vmatpush1.bf16.msra.mxu0 0
  %100 = vmatprep.subr.bf16.mxu0 0
  %101 = vmatpush1.bf16.msra.mxu0 0
  %102 = vmatprep.subr.bf16.mxu0 0
  %103 = vmatpush1.bf16.msra.mxu0 0
  %104 = vmatprep.subr.bf16.mxu0 0
  %105 = vmatpush1.bf16.msra.mxu0 0
  %106 = vmatprep.subr.bf16.mxu0 0
  %107 = vmatpush1.bf16.msra.mxu0 0
  %108 = vmatprep.subr.bf16.mxu0 0
  %109 = vmatpush1.bf16.msra.mxu0 %v90
  %110 = vmatprep.subr.bf16.mxu0 0
  %111 = vmatpush1.bf16.msra.mxu0 %v89
  %112 = vmatprep.subr.bf16.mxu0 0
  %113 = vmatpush2.bf16.msra.mxu0 0
  %114 = vmatprep.subr.bf16.mxu0 0
  %115 = vmatpush2.bf16.msra.mxu0 0
  %116 = vmatprep.subr.bf16.mxu0 0
  %117 = vmatpush2.bf16.msra.mxu0 0
  %118 = vmatprep.subr.bf16.mxu0 0
  %119 = vmatpush2.bf16.msra.mxu0 0
  %120 = vmatprep.subr.bf16.mxu0 0
  %121 = vmatpush2.bf16.msra.mxu0 0
  %122 = vmatprep.subr.bf16.mxu0 0
  %123 = vmatpush2.bf16.msra.mxu0 0
  %124 = vmatprep.subr.bf16.mxu0 0
  %125 = vmatpush2.bf16.msra.mxu0 0
  %126 = vmatprep.subr.bf16.mxu0 0
  %127 = vmatpush2.bf16.msra.mxu0 0
  %128 = vmatprep.mubr.bf16.mxu0 0
  %129 = vmatmul.mubr.bf16.gmra.mxu0 %v94
  %v130 = vpop.f32.mrf.mxu0
  %v131 = vadd.f32 0.0, %v130
  %v132 = vpop.f32.mrf.mxu0
  %v133 = vpop.f32.mrf.mxu0
  %v134 = vpop.f32.mrf.mxu0
  %135 = vdwg.mxu0
  %s136 = scalar_lea.vmem %s2, 8
  %137 = vst [vmem:[%s136] sm:$0xff] %v131
  // Predicated region
  $region10: #{remote_moe_forward.1} parent=0 // pred_check
    _
  $region11: #{remote_moe_forward.1} parent=0 // pred_check_branch
    %139 = sbr.rel (0) target = $region13
  $region12: #{remote_moe_forward.1} parent=0 // pred_region
    _
  $region13: #{remote_moe_forward.1} parent=0 // pred_fallthru
    _
  // Predicated region
  $region14: #{remote_moe_forward.1} parent=0 // pred_check
    _
  $region15: #{remote_moe_forward.1} parent=0 // pred_check_branch
    %141 = sbr.rel (0) target = $region17
  $region16: #{remote_moe_forward.1} parent=0 // pred_region
    _
  $region17: #{remote_moe_forward.1} parent=0 // pred_fallthru
    _

</llo_original>
